<compile_context>
chip_gen: v7x
topology: tpu7x:2x2x1
jax: 0.10.0
libtpu: 0.0.40
codegen_flags: <defaults>
</compile_context>

<pallas_src>
import math

import jax
import jax.numpy as jnp
from jax.experimental import pallas as pl
from jax.experimental.pallas import tpu as pltpu

LANE = 128     # TPU lane width: pad feature (last-dim) sizes to this
SUBLANE = 8    # f32 sublane: pad / tile the batch dim in multiples of this


def _round_up(n, m):
    return ((n + m - 1) // m) * m


def _nbytes(a):
    return a.size * jnp.dtype(a.dtype).itemsize


def _leaky_relu(x, slope=0.2):
    return jnp.where(x > 0, x, slope * x)


# --------------------------------------------------------------------------
# Kernel: one batch tile of the full 4-layer MLP.
# Weights/biases are VMEM-resident (constant index_map), activations pipeline.
# --------------------------------------------------------------------------
def generator_kernel(x_ref, y_ref,
                     w0x_ref, w0y_ref, b0_ref,
                     w1_ref, b1_ref,
                     w2_ref, b2_ref,
                     w3_ref, b3_ref,
                     o_ref):
    cdt = w0x_ref.dtype  # matmul dtype: f32 by default, bf16 on v6e/v7x path

    x = x_ref[...].astype(cdt)
    y = y_ref[...].astype(cdt)

    # Layer 0: cat([x, y], 1) @ W0 + b0  ==  x @ W0[:zdim] + y @ W0[zdim:] + b0
    h = (jnp.dot(x, w0x_ref[...], preferred_element_type=jnp.float32)
         + jnp.dot(y, w0y_ref[...], preferred_element_type=jnp.float32)
         + b0_ref[...])
    h = _leaky_relu(h)

    h = jnp.dot(h.astype(cdt), w1_ref[...],
                preferred_element_type=jnp.float32) + b1_ref[...]
    h = _leaky_relu(h)

    h = jnp.dot(h.astype(cdt), w2_ref[...],
                preferred_element_type=jnp.float32) + b2_ref[...]
    h = _leaky_relu(h)

    logits = jnp.dot(h.astype(cdt), w3_ref[...],
                     preferred_element_type=jnp.float32) + b3_ref[...]
    # Sigmoid: exp on the EUP, exact divide (keeps f32 elementwise everywhere).
    o_ref[...] = (1.0 / (1.0 + jnp.exp(-logits))).astype(o_ref.dtype)


# --------------------------------------------------------------------------
# Parameter init (matches nn.Linear defaults) + one-time padded preparation.
# --------------------------------------------------------------------------
def init_generator_params(key, num_condition, num_pixels, ngf, zdim=100):
    """U(-1/sqrt(fan_in), 1/sqrt(fan_in)); weights stored (in, out) = torch W.T."""
    n_features = zdim + num_condition
    dims = [(n_features, ngf), (ngf, 2 * ngf), (2 * ngf, 4 * ngf),
            (4 * ngf, num_pixels)]
    params = []
    for fan_in, fan_out in dims:
        key, kw, kb = jax.random.split(key, 3)
        bound = 1.0 / math.sqrt(fan_in)
        w = jax.random.uniform(kw, (fan_in, fan_out), jnp.float32, -bound, bound)
        b = jax.random.uniform(kb, (1, fan_out), jnp.float32, -bound, bound)
        params += [w, b]
    return tuple(params)


def _pad2(a, rows, cols):
    r, c = a.shape
    return jnp.pad(a, ((0, rows - r), (0, cols - c)))


def prepare_params(params, zdim, matmul_dtype=jnp.float32):
    """Split W0 into (noise, condition) row-blocks and zero-pad every hidden
    width to a multiple of 128 lanes.  One-time cost; zero padding is exact."""
    w0, b0, w1, b1, w2, b2, w3, b3 = params
    h0, h1, h2, n_out = w0.shape[1], w1.shape[1], w2.shape[1], w3.shape[1]
    h0p, h1p, h2p, n_outp = (_round_up(d, LANE) for d in (h0, h1, h2, n_out))
    num_condition = w0.shape[0] - zdim

    padded = (
        _pad2(w0[:zdim], zdim, h0p).astype(matmul_dtype),           # w0x
        _pad2(w0[zdim:], num_condition, h0p).astype(matmul_dtype),  # w0y
        _pad2(b0, 1, h0p),                                          # b0 (f32)
        _pad2(w1, h0p, h1p).astype(matmul_dtype),
        _pad2(b1, 1, h1p),
        _pad2(w2, h1p, h2p).astype(matmul_dtype),
        _pad2(b2, 1, h2p),
        _pad2(w3, h2p, n_outp).astype(matmul_dtype),
        _pad2(b3, 1, n_outp),
    )
    return padded, n_out


# --------------------------------------------------------------------------
# Wrapper: batch tiling, batch padding, pallas_call.
# --------------------------------------------------------------------------
def generator_forward(x, y, prepared, *, block_batch=256):
    """x: (B, zdim) f32, y: (B, num_condition) f32 -> (B, num_pixels) f32."""
    padded, n_out = prepared
    w0x, w0y, b0, w1, b1, w2, b2, w3, b3 = padded

    B, zdim = x.shape
    ncond = y.shape[1]
    n_outp = w3.shape[1]

    # Batch tile: multiple of 8 sublanes, up to `block_batch` rows per step.
    tb = min(block_batch, _round_up(B, SUBLANE))
    bp = _round_up(B, tb)
    if bp != B:
        x = jnp.pad(x, ((0, bp - B), (0, 0)))
        y = jnp.pad(y, ((0, bp - B), (0, 0)))
    grid = (bp // tb,)

    # Weights/biases: same block every grid step -> stay resident in VMEM.
    def resident(a):
        return pl.BlockSpec(a.shape, lambda i: (0,) * a.ndim)

    flops = 2 * bp * (zdim * w0x.shape[1] + ncond * w0y.shape[1]
                      + w1.shape[0] * w1.shape[1]
                      + w2.shape[0] * w2.shape[1]
                      + w3.shape[0] * w3.shape[1])
    bytes_accessed = (sum(_nbytes(t) for t in
                          (x, y, w0x, w0y, b0, w1, b1, w2, b2, w3, b3))
                      + bp * n_outp * 4)
    cost = pl.CostEstimate(flops=flops,
                           transcendentals=bp * n_outp,
                           bytes_accessed=bytes_accessed)

    out = pl.pallas_call(
        generator_kernel,
        out_shape=jax.ShapeDtypeStruct((bp, n_outp), jnp.float32),
        grid=grid,
        in_specs=[
            pl.BlockSpec((tb, zdim), lambda i: (i, 0)),
            pl.BlockSpec((tb, ncond), lambda i: (i, 0)),
            resident(w0x), resident(w0y), resident(b0),
            resident(w1), resident(b1),
            resident(w2), resident(b2),
            resident(w3), resident(b3),
        ],
        out_specs=pl.BlockSpec((tb, n_outp), lambda i: (i, 0)),
        compiler_params=pltpu.CompilerParams(
            dimension_semantics=("parallel",)),   # v7x: shard tiles over 2 TCs
        cost_estimate=cost,
    )(x, y, w0x, w0y, b0, w1, b1, w2, b2, w3, b3)

    return out[:B, :n_out]


# --------------------------------------------------------------------------
# Pure-JAX reference on the *unpadded* parameters (PyTorch semantics).
# --------------------------------------------------------------------------
def generator_forward_ref(x, y, params):
    w0, b0, w1, b1, w2, b2, w3, b3 = params
    xy = jnp.concatenate([x, y], axis=1).astype(jnp.float32)
    h = _leaky_relu(xy @ w0 + b0)
    h = _leaky_relu(h @ w1 + b1)
    h = _leaky_relu(h @ w2 + b2)
    return jax.nn.sigmoid(h @ w3 + b3)


if __name__ == "__main__":
    # Shapes consistent with the module: 16x16 image generator, 4 condition
    # features, ngf=32, default zdim=100, batch=2.
    batch, zdim, num_condition, ngf = 2, 100, 4, 32
    num_pixels = 16 * 16

    key = jax.random.PRNGKey(0)
    kp, kx, ky = jax.random.split(key, 3)

    params = init_generator_params(kp, num_condition, num_pixels, ngf, zdim=zdim)
    prepared_f32 = prepare_params(params, zdim, matmul_dtype=jnp.float32)

    x = jax.random.normal(kx, (batch, zdim), jnp.float32)            # noise z
    y = jax.random.normal(ky, (batch, num_condition), jnp.float32)   # condition

    # --- small-batch run (the requested demo shapes) ---
    out = generator_forward(x, y, prepared_f32)
    out = jax.block_until_ready(out)
    ref = generator_forward_ref(x, y, params)
    assert out.shape == (batch, num_pixels), out.shape
    assert jnp.allclose(out, ref, atol=1e-5, rtol=1e-5), "mismatch vs JAX reference"
    assert bool(jnp.all((out >= 0.0) & (out <= 1.0))), "sigmoid range violated"

    # --- larger, non-divisible batch: exercises batch tiling + padding path ---
    kx2, ky2 = jax.random.split(jax.random.PRNGKey(1))
    xb = jax.random.normal(kx2, (300, zdim), jnp.float32)
    yb = jax.random.normal(ky2, (300, num_condition), jnp.float32)
    outb = jax.block_until_ready(generator_forward(xb, yb, prepared_f32))
    refb = generator_forward_ref(xb, yb, params)
    assert outb.shape == (300, num_pixels)
    assert jnp.allclose(outb, refb, atol=1e-5, rtol=1e-5), "tiled batch mismatch"

    # --- bf16 matmul path (v6e/v7x MXU); elementwise math stays f32 ---
    prepared_bf16 = prepare_params(params, zdim, matmul_dtype=jnp.bfloat16)
    out_bf16 = jax.block_until_ready(generator_forward(x, y, prepared_bf16))
    assert out_bf16.shape == (batch, num_pixels)
    assert bool(jnp.all((out_bf16 >= 0.0) & (out_bf16 <= 1.0)))
    assert jnp.allclose(out_bf16, ref, atol=1e-1), "bf16 path diverged"

    print("KERNEL_OK")
</pallas_src>

<mosaic_0001>
module attributes {stable_mosaic.version = 11 : i64} {
  func.func @generator_kernel(%arg0: i32, %arg1: memref<8x100xf32, #tpu.memory_space<vmem>>, %arg2: memref<8x4xf32, #tpu.memory_space<vmem>>, %arg3: memref<100x128xf32, #tpu.memory_space<vmem>>, %arg4: memref<4x128xf32, #tpu.memory_space<vmem>>, %arg5: memref<1x128xf32, #tpu.memory_space<vmem>>, %arg6: memref<128x128xf32, #tpu.memory_space<vmem>>, %arg7: memref<1x128xf32, #tpu.memory_space<vmem>>, %arg8: memref<128x128xf32, #tpu.memory_space<vmem>>, %arg9: memref<1x128xf32, #tpu.memory_space<vmem>>, %arg10: memref<128x256xf32, #tpu.memory_space<vmem>>, %arg11: memref<1x256xf32, #tpu.memory_space<vmem>>, %arg12: memref<8x256xf32, #tpu.memory_space<vmem>>) attributes {dimension_semantics = [#tpu.dimension_semantics<parallel>], iteration_bounds = array<i64: 1>, scalar_prefetch = 0 : i64, scratch_operands = 0 : i64, tpu.core_type = #tpu.core_type<tc>, window_params = [{transform_indices = @transform_0, window_bounds = array<i64: 8, 100>}, {transform_indices = @transform_1, window_bounds = array<i64: 8, 4>}, {pipeline_mode = #tpu.pipeline_mode<synchronous>, transform_indices = @transform_2, window_bounds = array<i64: 100, 128>}, {pipeline_mode = #tpu.pipeline_mode<synchronous>, transform_indices = @transform_3, window_bounds = array<i64: 4, 128>}, {pipeline_mode = #tpu.pipeline_mode<synchronous>, transform_indices = @transform_4, window_bounds = array<i64: 1, 128>}, {pipeline_mode = #tpu.pipeline_mode<synchronous>, transform_indices = @transform_5, window_bounds = array<i64: 128, 128>}, {pipeline_mode = #tpu.pipeline_mode<synchronous>, transform_indices = @transform_6, window_bounds = array<i64: 1, 128>}, {pipeline_mode = #tpu.pipeline_mode<synchronous>, transform_indices = @transform_7, window_bounds = array<i64: 128, 128>}, {pipeline_mode = #tpu.pipeline_mode<synchronous>, transform_indices = @transform_8, window_bounds = array<i64: 1, 128>}, {pipeline_mode = #tpu.pipeline_mode<synchronous>, transform_indices = @transform_9, window_bounds = array<i64: 128, 256>}, {pipeline_mode = #tpu.pipeline_mode<synchronous>, transform_indices = @transform_10, window_bounds = array<i64: 1, 256>}, {transform_indices = @transform_11, window_bounds = array<i64: 8, 256>}]} {
    %c0 = arith.constant 0 : index
    %c0_0 = arith.constant 0 : index
    %0 = vector.load %arg1[%c0, %c0_0] : memref<8x100xf32, #tpu.memory_space<vmem>>, vector<8x100xf32>
    %c0_1 = arith.constant 0 : index
    %c0_2 = arith.constant 0 : index
    %1 = vector.load %arg2[%c0_1, %c0_2] : memref<8x4xf32, #tpu.memory_space<vmem>>, vector<8x4xf32>
    %c0_3 = arith.constant 0 : index
    %c0_4 = arith.constant 0 : index
    %2 = vector.load %arg3[%c0_3, %c0_4] : memref<100x128xf32, #tpu.memory_space<vmem>>, vector<100x128xf32>
    %cst = arith.constant dense<0.000000e+00> : vector<8x128xf32>
    %3 = tpu.matmul %0, %2, %cst {dimension_numbers = #tpu.dot_dimension_numbers<[1], [0], [0], [1], [0, 0, 1, 1], [], []>} : vector<8x100xf32>, vector<100x128xf32>, vector<8x128xf32> -> vector<8x128xf32>
    %c0_5 = arith.constant 0 : index
    %c0_6 = arith.constant 0 : index
    %4 = vector.load %arg4[%c0_5, %c0_6] : memref<4x128xf32, #tpu.memory_space<vmem>>, vector<4x128xf32>
    %cst_7 = arith.constant dense<0.000000e+00> : vector<8x128xf32>
    %5 = tpu.matmul %1, %4, %cst_7 {dimension_numbers = #tpu.dot_dimension_numbers<[1], [0], [0], [1], [0, 0, 1, 1], [], []>} : vector<8x4xf32>, vector<4x128xf32>, vector<8x128xf32> -> vector<8x128xf32>
    %6 = arith.addf %3, %5 : vector<8x128xf32>
    %c0_8 = arith.constant 0 : index
    %c0_9 = arith.constant 0 : index
    %7 = vector.load %arg5[%c0_8, %c0_9] : memref<1x128xf32, #tpu.memory_space<vmem>>, vector<1x128xf32>
    %8 = vector.broadcast %7 : vector<1x128xf32> to vector<8x128xf32>
    %9 = arith.addf %6, %8 : vector<8x128xf32>
    %cst_10 = arith.constant 0.000000e+00 : f32
    %10 = vector.broadcast %cst_10 : f32 to vector<8x128xf32>
    %11 = arith.cmpf ogt, %9, %10 : vector<8x128xf32>
    %cst_11 = arith.constant 2.000000e-01 : f32
    %12 = vector.broadcast %cst_11 : f32 to vector<8x128xf32>
    %13 = arith.mulf %12, %9 : vector<8x128xf32>
    %14 = arith.select %11, %9, %13 : vector<8x128xi1>, vector<8x128xf32>
    %c0_12 = arith.constant 0 : index
    %c0_13 = arith.constant 0 : index
    %15 = vector.load %arg6[%c0_12, %c0_13] : memref<128x128xf32, #tpu.memory_space<vmem>>, vector<128x128xf32>
    %cst_14 = arith.constant dense<0.000000e+00> : vector<8x128xf32>
    %16 = tpu.matmul %14, %15, %cst_14 {dimension_numbers = #tpu.dot_dimension_numbers<[1], [0], [0], [1], [0, 0, 1, 1], [], []>} : vector<8x128xf32>, vector<128x128xf32>, vector<8x128xf32> -> vector<8x128xf32>
    %c0_15 = arith.constant 0 : index
    %c0_16 = arith.constant 0 : index
    %17 = vector.load %arg7[%c0_15, %c0_16] : memref<1x128xf32, #tpu.memory_space<vmem>>, vector<1x128xf32>
    %18 = vector.broadcast %17 : vector<1x128xf32> to vector<8x128xf32>
    %19 = arith.addf %16, %18 : vector<8x128xf32>
    %cst_17 = arith.constant 0.000000e+00 : f32
    %20 = vector.broadcast %cst_17 : f32 to vector<8x128xf32>
    %21 = arith.cmpf ogt, %19, %20 : vector<8x128xf32>
    %cst_18 = arith.constant 2.000000e-01 : f32
    %22 = vector.broadcast %cst_18 : f32 to vector<8x128xf32>
    %23 = arith.mulf %22, %19 : vector<8x128xf32>
    %24 = arith.select %21, %19, %23 : vector<8x128xi1>, vector<8x128xf32>
    %c0_19 = arith.constant 0 : index
    %c0_20 = arith.constant 0 : index
    %25 = vector.load %arg8[%c0_19, %c0_20] : memref<128x128xf32, #tpu.memory_space<vmem>>, vector<128x128xf32>
    %cst_21 = arith.constant dense<0.000000e+00> : vector<8x128xf32>
    %26 = tpu.matmul %24, %25, %cst_21 {dimension_numbers = #tpu.dot_dimension_numbers<[1], [0], [0], [1], [0, 0, 1, 1], [], []>} : vector<8x128xf32>, vector<128x128xf32>, vector<8x128xf32> -> vector<8x128xf32>
    %c0_22 = arith.constant 0 : index
    %c0_23 = arith.constant 0 : index
    %27 = vector.load %arg9[%c0_22, %c0_23] : memref<1x128xf32, #tpu.memory_space<vmem>>, vector<1x128xf32>
    %28 = vector.broadcast %27 : vector<1x128xf32> to vector<8x128xf32>
    %29 = arith.addf %26, %28 : vector<8x128xf32>
    %cst_24 = arith.constant 0.000000e+00 : f32
    %30 = vector.broadcast %cst_24 : f32 to vector<8x128xf32>
    %31 = arith.cmpf ogt, %29, %30 : vector<8x128xf32>
    %cst_25 = arith.constant 2.000000e-01 : f32
    %32 = vector.broadcast %cst_25 : f32 to vector<8x128xf32>
    %33 = arith.mulf %32, %29 : vector<8x128xf32>
    %34 = arith.select %31, %29, %33 : vector<8x128xi1>, vector<8x128xf32>
    %c0_26 = arith.constant 0 : index
    %c0_27 = arith.constant 0 : index
    %35 = vector.load %arg10[%c0_26, %c0_27] : memref<128x256xf32, #tpu.memory_space<vmem>>, vector<128x256xf32>
    %cst_28 = arith.constant dense<0.000000e+00> : vector<8x256xf32>
    %36 = tpu.matmul %34, %35, %cst_28 {dimension_numbers = #tpu.dot_dimension_numbers<[1], [0], [0], [1], [0, 0, 1, 1], [], []>} : vector<8x128xf32>, vector<128x256xf32>, vector<8x256xf32> -> vector<8x256xf32>
    %c0_29 = arith.constant 0 : index
    %c0_30 = arith.constant 0 : index
    %37 = vector.load %arg11[%c0_29, %c0_30] : memref<1x256xf32, #tpu.memory_space<vmem>>, vector<1x256xf32>
    %38 = vector.broadcast %37 : vector<1x256xf32> to vector<8x256xf32>
    %39 = arith.addf %36, %38 : vector<8x256xf32>
    %cst_31 = arith.constant 0.000000e+00 : f32
    %40 = vector.broadcast %cst_31 : f32 to vector<8x256xf32>
    %41 = arith.subf %40, %39 : vector<8x256xf32>
    %42 = math.exp %41 : vector<8x256xf32>
    %cst_32 = arith.constant 1.000000e+00 : f32
    %43 = vector.broadcast %cst_32 : f32 to vector<8x256xf32>
    %44 = arith.addf %43, %42 : vector<8x256xf32>
    %cst_33 = arith.constant 1.000000e+00 : f32
    %45 = vector.broadcast %cst_33 : f32 to vector<8x256xf32>
    %46 = arith.divf %45, %44 : vector<8x256xf32>
    %c0_34 = arith.constant 0 : index
    %c0_35 = arith.constant 0 : index
    %47 = vector.load %arg12[%c0_34, %c0_35] : memref<8x256xf32, #tpu.memory_space<vmem>>, vector<8x256xf32>
    tpu.vector_store %arg12[%c0_34, %c0_35], %46 {strides = array<i32>} : memref<8x256xf32, #tpu.memory_space<vmem>>, vector<8x256xf32>,
    return
  }
  func.func @transform_0(%arg0: i32) -> (i32, i32) {
    %c0_i32 = arith.constant 0 : i32
    %c0_i32_0 = arith.constant 0 : i32
    return %arg0, %c0_i32 : i32, i32
  }
  func.func @transform_1(%arg0: i32) -> (i32, i32) {
    %c0_i32 = arith.constant 0 : i32
    %c0_i32_0 = arith.constant 0 : i32
    return %arg0, %c0_i32 : i32, i32
  }
  func.func @transform_2(%arg0: i32) -> (i32, i32) {
    %c0_i32 = arith.constant 0 : i32
    %c0_i32_0 = arith.constant 0 : i32
    %c0_i32_1 = arith.constant 0 : i32
    return %c0_i32, %c0_i32_0 : i32, i32
  }
  func.func @transform_3(%arg0: i32) -> (i32, i32) {
    %c0_i32 = arith.constant 0 : i32
    %c0_i32_0 = arith.constant 0 : i32
    %c0_i32_1 = arith.constant 0 : i32
    return %c0_i32, %c0_i32_0 : i32, i32
  }
  func.func @transform_4(%arg0: i32) -> (i32, i32) {
    %c0_i32 = arith.constant 0 : i32
    %c0_i32_0 = arith.constant 0 : i32
    %c0_i32_1 = arith.constant 0 : i32
    return %c0_i32, %c0_i32_0 : i32, i32
  }
  func.func @transform_5(%arg0: i32) -> (i32, i32) {
    %c0_i32 = arith.constant 0 : i32
    %c0_i32_0 = arith.constant 0 : i32
    %c0_i32_1 = arith.constant 0 : i32
    return %c0_i32, %c0_i32_0 : i32, i32
  }
  func.func @transform_6(%arg0: i32) -> (i32, i32) {
    %c0_i32 = arith.constant 0 : i32
    %c0_i32_0 = arith.constant 0 : i32
    %c0_i32_1 = arith.constant 0 : i32
    return %c0_i32, %c0_i32_0 : i32, i32
  }
  func.func @transform_7(%arg0: i32) -> (i32, i32) {
    %c0_i32 = arith.constant 0 : i32
    %c0_i32_0 = arith.constant 0 : i32
    %c0_i32_1 = arith.constant 0 : i32
    return %c0_i32, %c0_i32_0 : i32, i32
  }
  func.func @transform_8(%arg0: i32) -> (i32, i32) {
    %c0_i32 = arith.constant 0 : i32
    %c0_i32_0 = arith.constant 0 : i32
    %c0_i32_1 = arith.constant 0 : i32
    return %c0_i32, %c0_i32_0 : i32, i32
  }
  func.func @transform_9(%arg0: i32) -> (i32, i32) {
    %c0_i32 = arith.constant 0 : i32
    %c0_i32_0 = arith.constant 0 : i32
    %c0_i32_1 = arith.constant 0 : i32
    return %c0_i32, %c0_i32_0 : i32, i32
  }
  func.func @transform_10(%arg0: i32) -> (i32, i32) {
    %c0_i32 = arith.constant 0 : i32
    %c0_i32_0 = arith.constant 0 : i32
    %c0_i32_1 = arith.constant 0 : i32
    return %c0_i32, %c0_i32_0 : i32, i32
  }
  func.func @transform_11(%arg0: i32) -> (i32, i32) {
    %c0_i32 = arith.constant 0 : i32
    %c0_i32_0 = arith.constant 0 : i32
    return %arg0, %c0_i32 : i32, i32
  }
}

</mosaic_0001>

<llo_original>
// kernel: tpu_custom_call.1
$region0: #{tpu_custom_call.1}
  #allocation0 [shape = 'u32[]', space=smem, size = 0x4, offset = 0x4, fixed_abs, tag = 'smem constant byte address 0x4 - core index']
  #allocation1 [shape = 'u32[144,128]{1,0:T(1,128)}', space=vmem, size = 0x12000, scoped, tag = 'internal scratch']
  %s0 = inlined_call_operand.vmem [shape: f32[8,100], index: 0, kind: input, shape index: {}]
  %s1 = inlined_call_operand.vmem [shape: f32[8,4], index: 1, kind: input, shape index: {}]
  %s2 = inlined_call_operand.hbm [shape: f32[100,128], index: 2, kind: input, shape index: {}]
  %s3 = inlined_call_operand.vmem [shape: f32[4,128], index: 3, kind: input, shape index: {}]
  %s4 = inlined_call_operand.vmem [shape: f32[1,128], index: 4, kind: input, shape index: {}]
  %s5 = inlined_call_operand.hbm [shape: f32[128,128], index: 5, kind: input, shape index: {}]
  %s6 = inlined_call_operand.vmem [shape: f32[1,128], index: 6, kind: input, shape index: {}]
  %s7 = inlined_call_operand.hbm [shape: f32[128,128], index: 7, kind: input, shape index: {}]
  %s8 = inlined_call_operand.vmem [shape: f32[1,128], index: 8, kind: input, shape index: {}]
  %s9 = inlined_call_operand.hbm [shape: f32[128,256], index: 9, kind: input, shape index: {}]
  %s10 = inlined_call_operand.vmem [shape: f32[1,256], index: 10, kind: input, shape index: {}]
  %s11 = inlined_call_operand.hbm [shape: f32[8,256], index: 11, kind: output, shape index: {}]
  %s12 = sld [smem:[#allocation0]]
  $region70: #{tpu_custom_call.1} parent=0
    _
  %s14 = ssub.s32 1, %s12
  %s15 = scalar_select 0, %s14, %s12
  $region1: #{tpu_custom_call.1} parent=0
    #allocation2 [shape = 'u8[53248]{0}', space=vmem, size = 0xd000, scoped, tag = 'input window, operand 2, single buffered']
    #allocation3 [shape = 's32[1]{0}', space=sflag, size = 0x4, scoped, tag = 'scoped memory for tpu_custom_call.1']
    #allocation4 [shape = 's32[1]{0}', space=sflag, size = 0x4, scoped, tag = 'scoped memory for tpu_custom_call.1']
    #allocation5 [shape = 'u8[65536]{0}', space=vmem, size = 0x10000, scoped, tag = 'input window, operand 5, single buffered']
    #allocation6 [shape = 's32[1]{0}', space=sflag, size = 0x4, scoped, tag = 'scoped memory for tpu_custom_call.1']
    #allocation7 [shape = 'u8[65536]{0}', space=vmem, size = 0x10000, scoped, tag = 'input window, operand 7, single buffered']
    #allocation8 [shape = 'u8[131072]{0}', space=vmem, size = 0x20000, scoped, tag = 'input window, operand 9, single buffered']
    #allocation9 [shape = 's32[1]{0}', space=sflag, size = 0x4, scoped, tag = 'scoped memory for tpu_custom_call.1']
    #allocation10 [shape = 'u8[8192]{0}', space=vmem, size = 0x2000, scoped, tag = 'output window, operand 0, single buffered']
    %16 = vsyncpa [#allocation3], 0
    %17 = vsyncpa [#allocation6], 0
    %18 = vsyncpa [#allocation9], 0
    %19 = vsyncpa [#allocation4], 0
    // Predicated region
    $region2: #{tpu_custom_call.1} parent=1 // pred_check
      _
    $region3: #{tpu_custom_call.1} parent=1 // pred_check_branch
      %21 = sbr.rel (0) target = $region5
    $region4: #{tpu_custom_call.1} parent=1 // pred_region
      _
    $region5: #{tpu_custom_call.1} parent=1 // pred_fallthru
      _
    // Predicated region
    $region6: #{tpu_custom_call.1} parent=1 // pred_check
      _
    $region7: #{tpu_custom_call.1} parent=1 // pred_check_branch
      %23 = sbr.rel (0) target = $region9
    $region8: #{tpu_custom_call.1} parent=1 // pred_region
      _
    $region9: #{tpu_custom_call.1} parent=1 // pred_fallthru
      _
    // Predicated region
    $region10: #{tpu_custom_call.1} parent=1 // pred_check
      _
    $region11: #{tpu_custom_call.1} parent=1 // pred_check_branch
      %25 = sbr.rel (0) target = $region13
    $region12: #{tpu_custom_call.1} parent=1 // pred_region
      %s27 = ssub.s32 1664, 1664
      %28 = vsyncadd [#allocation3], %s27
      %s29 = sshll.u32 [#allocation2], 4
      %s30 = int_to_ptr.vmem [resolvable:$true] %s29
      %35 = dma.hbm_to_vmem [thread:$0]  %s2, 1664, %s30, [#allocation3], 128, 128, 8
    $region13: #{tpu_custom_call.1} parent=1 // pred_fallthru
      _
    // Predicated region
    $region14: #{tpu_custom_call.1} parent=1 // pred_check
      _
    $region15: #{tpu_custom_call.1} parent=1 // pred_check_branch
      %37 = sbr.rel (0) target = $region17
    $region16: #{tpu_custom_call.1} parent=1 // pred_region
      _
    $region17: #{tpu_custom_call.1} parent=1 // pred_fallthru
      _
    // Predicated region
    $region18: #{tpu_custom_call.1} parent=1 // pred_check
      _
    $region19: #{tpu_custom_call.1} parent=1 // pred_check_branch
      %39 = sbr.rel (0) target = $region21
    $region20: #{tpu_custom_call.1} parent=1 // pred_region
      _
    $region21: #{tpu_custom_call.1} parent=1 // pred_fallthru
      _
    // Predicated region
    $region22: #{tpu_custom_call.1} parent=1 // pred_check
      _
    $region23: #{tpu_custom_call.1} parent=1 // pred_check_branch
      %41 = sbr.rel (0) target = $region25
    $region24: #{tpu_custom_call.1} parent=1 // pred_region
      %s43 = ssub.s32 2048, 2048
      %44 = vsyncadd [#allocation6], %s43
      %s45 = sshll.u32 [#allocation5], 4
      %s46 = int_to_ptr.vmem [resolvable:$true] %s45
      %51 = dma.hbm_to_vmem [thread:$0]  %s5, 2048, %s46, [#allocation6], 128, 128, 8
    $region25: #{tpu_custom_call.1} parent=1 // pred_fallthru
      _
    // Predicated region
    $region26: #{tpu_custom_call.1} parent=1 // pred_check
      _
    $region27: #{tpu_custom_call.1} parent=1 // pred_check_branch
      %53 = sbr.rel (0) target = $region29
    $region28: #{tpu_custom_call.1} parent=1 // pred_region
      _
    $region29: #{tpu_custom_call.1} parent=1 // pred_fallthru
      _
    // Predicated region
    $region30: #{tpu_custom_call.1} parent=1 // pred_check
      _
    $region31: #{tpu_custom_call.1} parent=1 // pred_check_branch
      %55 = sbr.rel (0) target = $region33
    $region32: #{tpu_custom_call.1} parent=1 // pred_region
      %s57 = ssub.s32 2048, 2048
      %58 = vsyncadd [#allocation6], %s57
      %s59 = sshll.u32 [#allocation7], 4
      %s60 = int_to_ptr.vmem [resolvable:$true] %s59
      %65 = dma.hbm_to_vmem [thread:$0]  %s7, 2048, %s60, [#allocation6], 128, 128, 8
    $region33: #{tpu_custom_call.1} parent=1 // pred_fallthru
      _
    // Predicated region
    $region34: #{tpu_custom_call.1} parent=1 // pred_check
      _
    $region35: #{tpu_custom_call.1} parent=1 // pred_check_branch
      %67 = sbr.rel (0) target = $region37
    $region36: #{tpu_custom_call.1} parent=1 // pred_region
      _
    $region37: #{tpu_custom_call.1} parent=1 // pred_fallthru
      _
    // Predicated region
    $region38: #{tpu_custom_call.1} parent=1 // pred_check
      _
    $region39: #{tpu_custom_call.1} parent=1 // pred_check_branch
      %69 = sbr.rel (0) target = $region41
    $region40: #{tpu_custom_call.1} parent=1 // pred_region
      %s71 = ssub.s32 4096, 4096
      %72 = vsyncadd [#allocation9], %s71
      %s73 = sshll.u32 [#allocation8], 4
      %s74 = int_to_ptr.vmem [resolvable:$true] %s73
      %79 = dma.hbm_to_vmem [thread:$0]  %s9, 4096, %s74, [#allocation9], 256, 256, 16
    $region41: #{tpu_custom_call.1} parent=1 // pred_fallthru
      _
    // Predicated region
    $region42: #{tpu_custom_call.1} parent=1 // pred_check
      _
    $region43: #{tpu_custom_call.1} parent=1 // pred_check_branch
      %81 = sbr.rel (0) target = $region45
    $region44: #{tpu_custom_call.1} parent=1 // pred_region
      _
    $region45: #{tpu_custom_call.1} parent=1 // pred_fallthru
      _
    // Predicated region
    $region46: #{tpu_custom_call.1} parent=1 // pred_check
      _
    $region47: #{tpu_custom_call.1} parent=1 // pred_check_branch
      %83 = sbr.rel (0) target = $region49
    $region48: #{tpu_custom_call.1} parent=1 // pred_region
      %84 = dma.done [#allocation3], 1664
    $region49: #{tpu_custom_call.1} parent=1 // pred_fallthru
      _
    // Predicated region
    $region50: #{tpu_custom_call.1} parent=1 // pred_check
      _
    $region51: #{tpu_custom_call.1} parent=1 // pred_check_branch
      %86 = sbr.rel (0) target = $region53
    $region52: #{tpu_custom_call.1} parent=1 // pred_region
      %87 = dma.done [#allocation6], 2048
    $region53: #{tpu_custom_call.1} parent=1 // pred_fallthru
      _
    // Predicated region
    $region54: #{tpu_custom_call.1} parent=1 // pred_check
      _
    $region55: #{tpu_custom_call.1} parent=1 // pred_check_branch
      %89 = sbr.rel (0) target = $region57
    $region56: #{tpu_custom_call.1} parent=1 // pred_region
      %90 = dma.done [#allocation6], 2048
    $region57: #{tpu_custom_call.1} parent=1 // pred_fallthru
      _
    // Predicated region
    $region58: #{tpu_custom_call.1} parent=1 // pred_check
      _
    $region59: #{tpu_custom_call.1} parent=1 // pred_check_branch
      %92 = sbr.rel (0) target = $region61
    $region60: #{tpu_custom_call.1} parent=1 // pred_region
      %93 = dma.done [#allocation9], 4096
    $region61: #{tpu_custom_call.1} parent=1 // pred_fallthru
      _
    %v94 = vld [vmem:[%s0] sm:$0xff]
    %v95 = vld [vmem:[%s1] sm:$0xff]
    %v96 = vld [vmem:[#allocation2] sm:$0xff]
    %v97 = vld [vmem:[#allocation2 + $0x8] sm:$0xff]
    %v98 = vld [vmem:[#allocation2 + $0x10] sm:$0xff]
    %v99 = vld [vmem:[#allocation2 + $0x18] sm:$0xff]
    %v100 = vld [vmem:[#allocation2 + $0x20] sm:$0xff]
    %v101 = vld [vmem:[#allocation2 + $0x28] sm:$0xff]
    %v102 = vld [vmem:[#allocation2 + $0x30] sm:$0xff]
    %v103 = vld [vmem:[#allocation2 + $0x38] sm:$0xff]
    %v104 = vld [vmem:[#allocation2 + $0x40] sm:$0xff]
    %v105 = vld [vmem:[#allocation2 + $0x48] sm:$0xff]
    %v106 = vld [vmem:[#allocation2 + $0x50] sm:$0xff]
    %v107 = vld [vmem:[#allocation2 + $0x58] sm:$0xff]
    %v108 = vld [vmem:[#allocation2 + $0x60] sm:$0xf]
    %v109 = vld [vmem:[%s3] sm:$0xf]
    %vm110 = vcmask 31744
    %v112 = vsel %vm110, %v95, 0
    %vm114 = vcmask 1043456
    %v116 = vsel %vm114, %v109, 0
    %118 = vmatprep.subr.mxu0 0.0
    %119 = vmatpush1.msra.mxu0 %v116
    %120 = vmatprep.subr.mxu0 0.0
    %121 = vmatpush1.msra.mxu0 0.0
    %122 = vmatprep.subr.mxu0 0.0
    %123 = vmatpush1.msra.mxu0 0.0
    %124 = vmatprep.subr.mxu0 0.0
    %125 = vmatpush1.msra.mxu0 0.0
    %126 = vmatprep.subr.mxu0 0.0
    %127 = vmatpush1.msra.mxu0 0.0
    %128 = vmatprep.subr.mxu0 0.0
    %129 = vmatpush1.msra.mxu0 0.0
    %130 = vmatprep.subr.mxu0 0.0
    %131 = vmatpush1.msra.mxu0 0.0
    %132 = vmatprep.subr.mxu0 0.0
    %133 = vmatpush1.msra.mxu0 0.0
    %134 = vmatprep.subr.mxu0 0.0
    %135 = vmatpush1.msra.mxu0 0.0
    %136 = vmatprep.subr.mxu0 0.0
    %137 = vmatpush1.msra.mxu0 0.0
    %138 = vmatprep.subr.mxu0 0.0
    %139 = vmatpush1.msra.mxu0 0.0
    %140 = vmatprep.subr.mxu0 0.0
    %141 = vmatpush1.msra.mxu0 0.0
    %142 = vmatprep.subr.mxu0 0.0
    %143 = vmatpush1.msra.mxu0 0.0
    %144 = vmatprep.subr.mxu0 0.0
    %145 = vmatpush1.msra.mxu0 0.0
    %146 = vmatprep.subr.mxu0 0.0
    %147 = vmatpush1.msra.mxu0 0.0
    %148 = vmatprep.subr.mxu0 0.0
    %149 = vmatpush1.msra.mxu0 0.0
    %150 = vmatprep.subr.mxu0 0.0
    %151 = vmatpush1.msra.mxu0 0.0
    %152 = vmatprep.subr.mxu0 0.0
    %153 = vmatpush1.msra.mxu0 0.0
    %154 = vmatprep.subr.mxu0 0.0
    %155 = vmatpush1.msra.mxu0 0.0
    %156 = vmatprep.subr.mxu0 0.0
    %157 = vmatpush1.msra.mxu0 0.0
    %158 = vmatprep.subr.mxu0 0.0
    %159 = vmatpush1.msra.mxu0 0.0
    %160 = vmatprep.subr.mxu0 0.0
    %161 = vmatpush1.msra.mxu0 0.0
    %162 = vmatprep.subr.mxu0 0.0
    %163 = vmatpush1.msra.mxu0 0.0
    %164 = vmatprep.subr.mxu0 0.0
    %165 = vmatpush1.msra.mxu0 0.0
    %166 = vmatprep.subr.mxu0 0.0
    %167 = vmatpush1.msra.mxu0 0.0
    %168 = vmatprep.subr.mxu0 0.0
    %169 = vmatpush1.msra.mxu0 0.0
    %170 = vmatprep.subr.mxu0 0.0
    %171 = vmatpush1.msra.mxu0 0.0
    %172 = vmatprep.subr.mxu0 0.0
    %173 = vmatpush1.msra.mxu0 0.0
    %174 = vmatprep.subr.mxu0 0.0
    %175 = vmatpush1.msra.mxu0 0.0
    %176 = vmatprep.subr.mxu0 0.0
    %177 = vmatpush1.msra.mxu0 0.0
    %178 = vmatprep.subr.mxu0 0.0
    %179 = vmatpush1.msra.mxu0 0.0
    %180 = vmatprep.subr.mxu0 0.0
    %181 = vmatpush1.msra.mxu0 0.0
    %182 = vmatprep.mubr.f32.mxu0 0.0
    %183 = vmatmul.mubr.f32.gmra.mrb[0].mxu0 %v112
    %v184 = vpop.f32.mrb[0].mxu0
    %v185 = vadd.f32 0.0, %v184
    %v186 = vpop.f32.mrb[0].mxu0
    %187 = vdwg.mxu0
    %vm188 = vcmask 818176
    %v190 = vsel %vm188, %v94, 0
    %v193 = vsel %vm114, %v108, 0
    %195 = vmatprep.subr.mxu0 0.0
    %196 = vmatpush1.msra.mxu0 %v96
    %197 = vmatprep.subr.mxu0 0.0
    %198 = vmatpush1.msra.mxu0 %v97
    %199 = vmatprep.subr.mxu0 0.0
    %200 = vmatpush1.msra.mxu0 %v98
    %201 = vmatprep.subr.mxu0 0.0
    %202 = vmatpush1.msra.mxu0 %v99
    %203 = vmatprep.subr.mxu0 0.0
    %204 = vmatpush1.msra.mxu0 %v100
    %205 = vmatprep.subr.mxu0 0.0
    %206 = vmatpush1.msra.mxu0 %v101
    %207 = vmatprep.subr.mxu0 0.0
    %208 = vmatpush1.msra.mxu0 %v102
    %209 = vmatprep.subr.mxu0 0.0
    %210 = vmatpush1.msra.mxu0 %v103
    %211 = vmatprep.subr.mxu0 0.0
    %212 = vmatpush1.msra.mxu0 %v104
    %213 = vmatprep.subr.mxu0 0.0
    %214 = vmatpush1.msra.mxu0 %v105
    %215 = vmatprep.subr.mxu0 0.0
    %216 = vmatpush1.msra.mxu0 %v106
    %217 = vmatprep.subr.mxu0 0.0
    %218 = vmatpush1.msra.mxu0 %v107
    %219 = vmatprep.subr.mxu0 0.0
    %220 = vmatpush1.msra.mxu0 %v193
    %221 = vmatprep.subr.mxu0 0.0
    %222 = vmatpush1.msra.mxu0 0.0
    %223 = vmatprep.subr.mxu0 0.0
    %224 = vmatpush1.msra.mxu0 0.0
    %225 = vmatprep.subr.mxu0 0.0
    %226 = vmatpush1.msra.mxu0 0.0
    %227 = vmatprep.subr.mxu0 0.0
    %228 = vmatpush1.msra.mxu0 0.0
    %229 = vmatprep.subr.mxu0 0.0
    %230 = vmatpush1.msra.mxu0 0.0
    %231 = vmatprep.subr.mxu0 0.0
    %232 = vmatpush1.msra.mxu0 0.0
    %233 = vmatprep.subr.mxu0 0.0
    %234 = vmatpush1.msra.mxu0 0.0
    %235 = vmatprep.subr.mxu0 0.0
    %236 = vmatpush1.msra.mxu0 0.0
    %237 = vmatprep.subr.mxu0 0.0
    %238 = vmatpush1.msra.mxu0 0.0
    %239 = vmatprep.subr.mxu0 0.0
    %240 = vmatpush1.msra.mxu0 0.0
    %241 = vmatprep.subr.mxu0 0.0
    %242 = vmatpush1.msra.mxu0 0.0
    %243 = vmatprep.subr.mxu0 0.0
    %244 = vmatpush1.msra.mxu0 0.0
    %245 = vmatprep.subr.mxu0 0.0
    %246 = vmatpush1.msra.mxu0 0.0
    %247 = vmatprep.subr.mxu0 0.0
    %248 = vmatpush1.msra.mxu0 0.0
    %249 = vmatprep.subr.mxu0 0.0
    %250 = vmatpush1.msra.mxu0 0.0
    %251 = vmatprep.subr.mxu0 0.0
    %252 = vmatpush1.msra.mxu0 0.0
    %253 = vmatprep.subr.mxu0 0.0
    %254 = vmatpush1.msra.mxu0 0.0
    %255 = vmatprep.subr.mxu0 0.0
    %256 = vmatpush1.msra.mxu0 0.0
    %257 = vmatprep.subr.mxu0 0.0
    %258 = vmatpush1.msra.mxu0 0.0
    %259 = vmatprep.mubr.f32.mxu0 0.0
    %260 = vmatmul.mubr.f32.gmra.mrb[0].mxu0 %v190
    %v261 = vpop.f32.mrb[0].mxu0
    %v262 = vadd.f32 %v185, %v261
    %v263 = vpop.f32.mrb[0].mxu0
    %264 = vdwg.mxu0
    %v265 = vld [vmem:[%s4] sm:$0x1]
    %v267 = vlaneseq
    %v268 = vshrl.u32 %v267, 7
    %v269 = vsub.s32 0, %v268
    %v270 = vrot.slane %v265, %v269
    %v272 = vadd.f32 %v262, %v270
    %vm273 = vcmp.gt.f32.partialorder %v272, 0.0
    %v274 = vmul.f32 %v272, 0.2
    %v275 = vsel %vm273, %v272, %v274
    %v276 = vld [vmem:[#allocation5] sm:$0xff]
    %v277 = vld [vmem:[#allocation5 + $0x8] sm:$0xff]
    %v278 = vld [vmem:[#allocation5 + $0x10] sm:$0xff]
    %v279 = vld [vmem:[#allocation5 + $0x18] sm:$0xff]
    %v280 = vld [vmem:[#allocation5 + $0x20] sm:$0xff]
    %v281 = vld [vmem:[#allocation5 + $0x28] sm:$0xff]
    %v282 = vld [vmem:[#allocation5 + $0x30] sm:$0xff]
    %v283 = vld [vmem:[#allocation5 + $0x38] sm:$0xff]
    %v284 = vld [vmem:[#allocation5 + $0x40] sm:$0xff]
    %v285 = vld [vmem:[#allocation5 + $0x48] sm:$0xff]
    %v286 = vld [vmem:[#allocation5 + $0x50] sm:$0xff]
    %v287 = vld [vmem:[#allocation5 + $0x58] sm:$0xff]
    %v288 = vld [vmem:[#allocation5 + $0x60] sm:$0xff]
    %v289 = vld [vmem:[#allocation5 + $0x68] sm:$0xff]
    %v290 = vld [vmem:[#allocation5 + $0x70] sm:$0xff]
    %v291 = vld [vmem:[#allocation5 + $0x78] sm:$0xff]
    %v292 = vld [vmem:[%s6] sm:$0x1]
    %v294 = vlaneseq
    %v295 = vshrl.u32 %v294, 7
    %v296 = vsub.s32 0, %v295
    %v297 = vrot.slane %v292, %v296
    %299 = vmatprep.subr.mxu0 0.0
    %300 = vmatpush1.msra.mxu0 %v276
    %301 = vmatprep.subr.mxu0 0.0
    %302 = vmatpush1.msra.mxu0 %v277
    %303 = vmatprep.subr.mxu0 0.0
    %304 = vmatpush1.msra.mxu0 %v278
    %305 = vmatprep.subr.mxu0 0.0
    %306 = vmatpush1.msra.mxu0 %v279
    %307 = vmatprep.subr.mxu0 0.0
    %308 = vmatpush1.msra.mxu0 %v280
    %309 = vmatprep.subr.mxu0 0.0
    %310 = vmatpush1.msra.mxu0 %v281
    %311 = vmatprep.subr.mxu0 0.0
    %312 = vmatpush1.msra.mxu0 %v282
    %313 = vmatprep.subr.mxu0 0.0
    %314 = vmatpush1.msra.mxu0 %v283
    %315 = vmatprep.subr.mxu0 0.0
    %316 = vmatpush1.msra.mxu0 %v284
    %317 = vmatprep.subr.mxu0 0.0
    %318 = vmatpush1.msra.mxu0 %v285
    %319 = vmatprep.subr.mxu0 0.0
    %320 = vmatpush1.msra.mxu0 %v286
    %321 = vmatprep.subr.mxu0 0.0
    %322 = vmatpush1.msra.mxu0 %v287
    %323 = vmatprep.subr.mxu0 0.0
    %324 = vmatpush1.msra.mxu0 %v288
    %325 = vmatprep.subr.mxu0 0.0
    %326 = vmatpush1.msra.mxu0 %v289
    %327 = vmatprep.subr.mxu0 0.0
    %328 = vmatpush1.msra.mxu0 %v290
    %329 = vmatprep.subr.mxu0 0.0
    %330 = vmatpush1.msra.mxu0 %v291
    %331 = vmatprep.subr.mxu0 0.0
    %332 = vmatpush1.msra.mxu0 0.0
    %333 = vmatprep.subr.mxu0 0.0
    %334 = vmatpush1.msra.mxu0 0.0
    %335 = vmatprep.subr.mxu0 0.0
    %336 = vmatpush1.msra.mxu0 0.0
    %337 = vmatprep.subr.mxu0 0.0
    %338 = vmatpush1.msra.mxu0 0.0
    %339 = vmatprep.subr.mxu0 0.0
    %340 = vmatpush1.msra.mxu0 0.0
    %341 = vmatprep.subr.mxu0 0.0
    %342 = vmatpush1.msra.mxu0 0.0
    %343 = vmatprep.subr.mxu0 0.0
    %344 = vmatpush1.msra.mxu0 0.0
    %345 = vmatprep.subr.mxu0 0.0
    %346 = vmatpush1.msra.mxu0 0.0
    %347 = vmatprep.subr.mxu0 0.0
    %348 = vmatpush1.msra.mxu0 0.0
    %349 = vmatprep.subr.mxu0 0.0
    %350 = vmatpush1.msra.mxu0 0.0
    %351 = vmatprep.subr.mxu0 0.0
    %352 = vmatpush1.msra.mxu0 0.0
    %353 = vmatprep.subr.mxu0 0.0
    %354 = vmatpush1.msra.mxu0 0.0
    %355 = vmatprep.subr.mxu0 0.0
    %356 = vmatpush1.msra.mxu0 0.0
    %357 = vmatprep.subr.mxu0 0.0
    %358 = vmatpush1.msra.mxu0 0.0
    %359 = vmatprep.subr.mxu0 0.0
    %360 = vmatpush1.msra.mxu0 0.0
    %361 = vmatprep.subr.mxu0 0.0
    %362 = vmatpush1.msra.mxu0 0.0
    %363 = vmatprep.mubr.f32.mxu0 0.0
    %364 = vmatmul.mubr.f32.gmra.mrb[0].mxu0 %v275
    %v365 = vpop.f32.mrb[0].mxu0
    %v366 = vadd.f32 %v297, %v365
    %v367 = vpop.f32.mrb[0].mxu0
    %368 = vdwg.mxu0
    %vm369 = vcmp.gt.f32.partialorder %v366, 0.0
    %v370 = vmul.f32 %v366, 0.2
    %v371 = vsel %vm369, %v366, %v370
    %v372 = vld [vmem:[#allocation7] sm:$0xff]
    %v373 = vld [vmem:[#allocation7 + $0x8] sm:$0xff]
    %v374 = vld [vmem:[#allocation7 + $0x10] sm:$0xff]
    %v375 = vld [vmem:[#allocation7 + $0x18] sm:$0xff]
    %v376 = vld [vmem:[#allocation7 + $0x20] sm:$0xff]
    %v377 = vld [vmem:[#allocation7 + $0x28] sm:$0xff]
    %v378 = vld [vmem:[#allocation7 + $0x30] sm:$0xff]
    %v379 = vld [vmem:[#allocation7 + $0x38] sm:$0xff]
    %v380 = vld [vmem:[#allocation7 + $0x40] sm:$0xff]
    %v381 = vld [vmem:[#allocation7 + $0x48] sm:$0xff]
    %v382 = vld [vmem:[#allocation7 + $0x50] sm:$0xff]
    %v383 = vld [vmem:[#allocation7 + $0x58] sm:$0xff]
    %v384 = vld [vmem:[#allocation7 + $0x60] sm:$0xff]
    %v385 = vld [vmem:[#allocation7 + $0x68] sm:$0xff]
    %v386 = vld [vmem:[#allocation7 + $0x70] sm:$0xff]
    %v387 = vld [vmem:[#allocation7 + $0x78] sm:$0xff]
    %v388 = vld [vmem:[%s8] sm:$0x1]
    %v390 = vlaneseq
    %v391 = vshrl.u32 %v390, 7
    %v392 = vsub.s32 0, %v391
    %v393 = vrot.slane %v388, %v392
    %395 = vmatprep.subr.mxu0 0.0
    %396 = vmatpush1.msra.mxu0 %v372
    %397 = vmatprep.subr.mxu0 0.0
    %398 = vmatpush1.msra.mxu0 %v373
    %399 = vmatprep.subr.mxu0 0.0
    %400 = vmatpush1.msra.mxu0 %v374
    %401 = vmatprep.subr.mxu0 0.0
    %402 = vmatpush1.msra.mxu0 %v375
    %403 = vmatprep.subr.mxu0 0.0
    %404 = vmatpush1.msra.mxu0 %v376
    %405 = vmatprep.subr.mxu0 0.0
    %406 = vmatpush1.msra.mxu0 %v377
    %407 = vmatprep.subr.mxu0 0.0
    %408 = vmatpush1.msra.mxu0 %v378
    %409 = vmatprep.subr.mxu0 0.0
    %410 = vmatpush1.msra.mxu0 %v379
    %411 = vmatprep.subr.mxu0 0.0
    %412 = vmatpush1.msra.mxu0 %v380
    %413 = vmatprep.subr.mxu0 0.0
    %414 = vmatpush1.msra.mxu0 %v381
    %415 = vmatprep.subr.mxu0 0.0
    %416 = vmatpush1.msra.mxu0 %v382
    %417 = vmatprep.subr.mxu0 0.0
    %418 = vmatpush1.msra.mxu0 %v383
    %419 = vmatprep.subr.mxu0 0.0
    %420 = vmatpush1.msra.mxu0 %v384
    %421 = vmatprep.subr.mxu0 0.0
    %422 = vmatpush1.msra.mxu0 %v385
    %423 = vmatprep.subr.mxu0 0.0
    %424 = vmatpush1.msra.mxu0 %v386
    %425 = vmatprep.subr.mxu0 0.0
    %426 = vmatpush1.msra.mxu0 %v387
    %427 = vmatprep.subr.mxu0 0.0
    %428 = vmatpush1.msra.mxu0 0.0
    %429 = vmatprep.subr.mxu0 0.0
    %430 = vmatpush1.msra.mxu0 0.0
    %431 = vmatprep.subr.mxu0 0.0
    %432 = vmatpush1.msra.mxu0 0.0
    %433 = vmatprep.subr.mxu0 0.0
    %434 = vmatpush1.msra.mxu0 0.0
    %435 = vmatprep.subr.mxu0 0.0
    %436 = vmatpush1.msra.mxu0 0.0
    %437 = vmatprep.subr.mxu0 0.0
    %438 = vmatpush1.msra.mxu0 0.0
    %439 = vmatprep.subr.mxu0 0.0
    %440 = vmatpush1.msra.mxu0 0.0
    %441 = vmatprep.subr.mxu0 0.0
    %442 = vmatpush1.msra.mxu0 0.0
    %443 = vmatprep.subr.mxu0 0.0
    %444 = vmatpush1.msra.mxu0 0.0
    %445 = vmatprep.subr.mxu0 0.0
    %446 = vmatpush1.msra.mxu0 0.0
    %447 = vmatprep.subr.mxu0 0.0
    %448 = vmatpush1.msra.mxu0 0.0
    %449 = vmatprep.subr.mxu0 0.0
    %450 = vmatpush1.msra.mxu0 0.0
    %451 = vmatprep.subr.mxu0 0.0
    %452 = vmatpush1.msra.mxu0 0.0
    %453 = vmatprep.subr.mxu0 0.0
    %454 = vmatpush1.msra.mxu0 0.0
    %455 = vmatprep.subr.mxu0 0.0
    %456 = vmatpush1.msra.mxu0 0.0
    %457 = vmatprep.subr.mxu0 0.0
    %458 = vmatpush1.msra.mxu0 0.0
    %459 = vmatprep.mubr.f32.mxu0 0.0
    %460 = vmatmul.mubr.f32.gmra.mrb[0].mxu0 %v371
    %v461 = vpop.f32.mrb[0].mxu0
    %v462 = vadd.f32 %v393, %v461
    %v463 = vpop.f32.mrb[0].mxu0
    %464 = vdwg.mxu0
    %vm465 = vcmp.gt.f32.partialorder %v462, 0.0
    %v466 = vmul.f32 %v462, 0.2
    %v467 = vsel %vm465, %v462, %v466
    %v468 = vld [vmem:[#allocation8] sm:$0xff]
    %v469 = vld [vmem:[#allocation8 + $0x8] sm:$0xff]
    %v470 = vld [vmem:[#allocation8 + $0x10] sm:$0xff]
    %v471 = vld [vmem:[#allocation8 + $0x18] sm:$0xff]
    %v472 = vld [vmem:[#allocation8 + $0x20] sm:$0xff]
    %v473 = vld [vmem:[#allocation8 + $0x28] sm:$0xff]
    %v474 = vld [vmem:[#allocation8 + $0x30] sm:$0xff]
    %v475 = vld [vmem:[#allocation8 + $0x38] sm:$0xff]
    %v476 = vld [vmem:[#allocation8 + $0x40] sm:$0xff]
    %v477 = vld [vmem:[#allocation8 + $0x48] sm:$0xff]
    %v478 = vld [vmem:[#allocation8 + $0x50] sm:$0xff]
    %v479 = vld [vmem:[#allocation8 + $0x58] sm:$0xff]
    %v480 = vld [vmem:[#allocation8 + $0x60] sm:$0xff]
    %v481 = vld [vmem:[#allocation8 + $0x68] sm:$0xff]
    %v482 = vld [vmem:[#allocation8 + $0x70] sm:$0xff]
    %v483 = vld [vmem:[#allocation8 + $0x78] sm:$0xff]
    %v484 = vld [vmem:[#allocation8 + $0x80] sm:$0xff]
    %v485 = vld [vmem:[#allocation8 + $0x88] sm:$0xff]
    %v486 = vld [vmem:[#allocation8 + $0x90] sm:$0xff]
    %v487 = vld [vmem:[#allocation8 + $0x98] sm:$0xff]
    %v488 = vld [vmem:[#allocation8 + $0xa0] sm:$0xff]
    %v489 = vld [vmem:[#allocation8 + $0xa8] sm:$0xff]
    %v490 = vld [vmem:[#allocation8 + $0xb0] sm:$0xff]
    %v491 = vld [vmem:[#allocation8 + $0xb8] sm:$0xff]
    %v492 = vld [vmem:[#allocation8 + $0xc0] sm:$0xff]
    %v493 = vld [vmem:[#allocation8 + $0xc8] sm:$0xff]
    %v494 = vld [vmem:[#allocation8 + $0xd0] sm:$0xff]
    %v495 = vld [vmem:[#allocation8 + $0xd8] sm:$0xff]
    %v496 = vld [vmem:[#allocation8 + $0xe0] sm:$0xff]
    %v497 = vld [vmem:[#allocation8 + $0xe8] sm:$0xff]
    %v498 = vld [vmem:[#allocation8 + $0xf0] sm:$0xff]
    %v499 = vld [vmem:[#allocation8 + $0xf8] sm:$0xff]
    %v500 = vld [vmem:[%s10] sm:$0x3]
    %v502 = vlaneseq
    %v503 = vshrl.u32 %v502, 7
    %v504 = vsub.s32 0, %v503
    %v505 = vrot.slane %v500, %v504
    %v506 = vlaneseq
    %v507 = vshrl.u32 %v506, 7
    %v508 = vsub.s32 1, %v507
    %v509 = vrot.slane %v500, %v508
    %512 = vmatprep.subr.mxu0 %v469
    %513 = vmatpush1.msra.mxu0 %v468
    %514 = vmatprep.subr.mxu0 %v471
    %515 = vmatpush1.msra.mxu0 %v470
    %516 = vmatprep.subr.mxu0 %v473
    %517 = vmatpush1.msra.mxu0 %v472
    %518 = vmatprep.subr.mxu0 %v475
    %519 = vmatpush1.msra.mxu0 %v474
    %520 = vmatprep.subr.mxu0 %v477
    %521 = vmatpush1.msra.mxu0 %v476
    %522 = vmatprep.subr.mxu0 %v479
    %523 = vmatpush1.msra.mxu0 %v478
    %524 = vmatprep.subr.mxu0 %v481
    %525 = vmatpush1.msra.mxu0 %v480
    %526 = vmatprep.subr.mxu0 %v483
    %527 = vmatpush1.msra.mxu0 %v482
    %528 = vmatprep.subr.mxu0 %v485
    %529 = vmatpush1.msra.mxu0 %v484
    %530 = vmatprep.subr.mxu0 %v487
    %531 = vmatpush1.msra.mxu0 %v486
    %532 = vmatprep.subr.mxu0 %v489
    %533 = vmatpush1.msra.mxu0 %v488
    %534 = vmatprep.subr.mxu0 %v491
    %535 = vmatpush1.msra.mxu0 %v490
    %536 = vmatprep.subr.mxu0 %v493
    %537 = vmatpush1.msra.mxu0 %v492
    %538 = vmatprep.subr.mxu0 %v495
    %539 = vmatpush1.msra.mxu0 %v494
    %540 = vmatprep.subr.mxu0 %v497
    %541 = vmatpush1.msra.mxu0 %v496
    %542 = vmatprep.subr.mxu0 %v499
    %543 = vmatpush1.msra.mxu0 %v498
    %544 = vmatprep.subr.mxu0 0.0
    %545 = vmatpush1.msra.mxu0 0.0
    %546 = vmatprep.subr.mxu0 0.0
    %547 = vmatpush1.msra.mxu0 0.0
    %548 = vmatprep.subr.mxu0 0.0
    %549 = vmatpush1.msra.mxu0 0.0
    %550 = vmatprep.subr.mxu0 0.0
    %551 = vmatpush1.msra.mxu0 0.0
    %552 = vmatprep.subr.mxu0 0.0
    %553 = vmatpush1.msra.mxu0 0.0
    %554 = vmatprep.subr.mxu0 0.0
    %555 = vmatpush1.msra.mxu0 0.0
    %556 = vmatprep.subr.mxu0 0.0
    %557 = vmatpush1.msra.mxu0 0.0
    %558 = vmatprep.subr.mxu0 0.0
    %559 = vmatpush1.msra.mxu0 0.0
    %560 = vmatprep.subr.mxu0 0.0
    %561 = vmatpush1.msra.mxu0 0.0
    %562 = vmatprep.subr.mxu0 0.0
    %563 = vmatpush1.msra.mxu0 0.0
    %564 = vmatprep.subr.mxu0 0.0
    %565 = vmatpush1.msra.mxu0 0.0
    %566 = vmatprep.subr.mxu0 0.0
    %567 = vmatpush1.msra.mxu0 0.0
    %568 = vmatprep.subr.mxu0 0.0
    %569 = vmatpush1.msra.mxu0 0.0
    %570 = vmatprep.subr.mxu0 0.0
    %571 = vmatpush1.msra.mxu0 0.0
    %572 = vmatprep.subr.mxu0 0.0
    %573 = vmatpush1.msra.mxu0 0.0
    %574 = vmatprep.subr.mxu0 0.0
    %575 = vmatpush1.msra.mxu0 0.0
    %576 = vmatprep.mubr.f32.mxu0 0.0
    %577 = vmatmul.mubr.f32.gmra.mrb[0].mxu0 %v467
    %v578 = vpop.f32.mrb[0].mxu0
    %v579 = vadd.f32 %v505, %v578
    %v580 = vpop.f32.mrb[0].mxu0
    %v581 = vadd.f32 %v509, %v580
    %582 = vdwg.mxu0
    %v583 = vsub.f32 0.0, %v579
    %v584 = vsub.f32 0.0, %v581
    %v585 = vmul.f32 %v583, 1.442695
    %v586 = vpow.pop %v585
    %v587 = vmul.f32 %v584, 1.442695
    %v588 = vpow.pop %v587
    %v589 = vadd.f32 %v586, 1.0
    %v590 = vadd.f32 %v588, 1.0
    %v591 = vrcp.pop %v589
    %v592 = vmul.f32 1.0, %v591
    %v593 = vrcp.pop %v590
    %v594 = vmul.f32 1.0, %v593
    %595 = vst [vmem:[#allocation10] sm:$0xff] %v592
    %596 = vst [vmem:[#allocation10 + $0x8] sm:$0xff] %v594
    // Predicated region
    $region62: #{tpu_custom_call.1} parent=1 // pred_check
      _
    $region63: #{tpu_custom_call.1} parent=1 // pred_check_branch
      %598 = sbr.rel (0) target = $region65
    $region64: #{tpu_custom_call.1} parent=1 // pred_region
      %s600 = ssub.s32 256, 256
      %601 = vsyncadd [#allocation4], %s600
      %s603 = sshll.u32 [#allocation10], 4
      %s604 = int_to_ptr.vmem [resolvable:$true] %s603
      %606 = dma.vmem_to_hbm [thread:$0]  %s604, 256, %s11, [#allocation4]
    $region65: #{tpu_custom_call.1} parent=1 // pred_fallthru
      _
    // Predicated region
    $region66: #{tpu_custom_call.1} parent=1 // pred_check
      _
    $region67: #{tpu_custom_call.1} parent=1 // pred_check_branch
      %608 = sbr.rel (0) target = $region69
    $region68: #{tpu_custom_call.1} parent=1 // pred_region
      %609 = dma.done [#allocation4], 256
    $region69: #{tpu_custom_call.1} parent=1 // pred_fallthru
      _
    %610 = vsyncpa [#allocation3], 1
    %611 = vsyncpa [#allocation6], 1
    %612 = vsyncpa [#allocation9], 1
    %613 = vsyncpa [#allocation4], 1

</llo_original>
